<compile_context>
chip_gen: v7x
topology: tpu7x:2x2x1
jax: 0.10.0
libtpu: 0.0.40
codegen_flags: <defaults>
</compile_context>

<pallas_src>
import functools

import jax
import jax.numpy as jnp
from jax import lax
from jax.experimental import pallas as pl
from jax.experimental.pallas import tpu as pltpu


def _round_up(x: int, m: int) -> int:
    return (x + m - 1) // m * m


def _critic_kernel(s_ref, a_ref, w1s_ref, w1a_ref, b1_ref, w2_ref, b2_ref,
                   wqt_ref, o_ref):
    # fc1 without materializing concat([state, action]):
    #   h1 = relu(state @ W1[:S] + action @ W1[S:] + b1)
    # bf16 operands, f32 accumulation; bias/ReLU in f32.
    s = s_ref[...].astype(jnp.bfloat16)
    a = a_ref[...].astype(jnp.bfloat16)
    h1 = jnp.dot(s, w1s_ref[...], preferred_element_type=jnp.float32)
    h1 = h1 + jnp.dot(a, w1a_ref[...], preferred_element_type=jnp.float32)
    h1 = jnp.maximum(h1 + b1_ref[...], 0.0)

    # fc2 + relu (bf16 MXU, f32 accumulate) — this is >90% of the FLOPs.
    h2 = jnp.dot(h1.astype(jnp.bfloat16), w2_ref[...],
                 preferred_element_type=jnp.float32)
    h2 = jnp.maximum(h2 + b2_ref[...], 0.0)

    # q head: contract wqt (1, H) with h2 (bb, H) on H directly (no h2.T / XLU
    # transpose).  Batch lands on the lane axis -> lane-dense (1, bb) store.
    q = lax.dot_general(
        wqt_ref[...], h2.astype(jnp.bfloat16),
        dimension_numbers=(((1,), (1,)), ((), ())),
        preferred_element_type=jnp.float32)
    o_ref[...] = q.astype(o_ref.dtype)


def prepare_critic_params(params, state_dim):
    """One-time param prep (do NOT call per forward): split W1, cast weights to bf16."""
    w1, b1, w2, b2, wq, bq = params
    H = w1.shape[1]
    return (
        w1[:state_dim].astype(jnp.bfloat16),      # (S, H)
        w1[state_dim:].astype(jnp.bfloat16),      # (A, H)
        b1.reshape(1, H).astype(jnp.float32),     # (1, H)
        w2.astype(jnp.bfloat16),                  # (H, H)
        b2.reshape(1, H).astype(jnp.float32),     # (1, H)
        wq.reshape(1, H).astype(jnp.bfloat16),    # (1, H) row-vector head weight
        bq.reshape(1, 1).astype(jnp.float32),     # (1, 1) head bias (added outside)
    )


@functools.partial(jax.jit, static_argnames=("block_b",))
def critic_forward(state, action, prepped, block_b=512):
    """Pallas-backed forward pass of Critic(state, action) -> (B, 1)."""
    w1s, w1a, b1_r, w2, b2_r, wqt, bq = prepped
    state = state.astype(jnp.float32)
    action = action.astype(jnp.float32)
    B, S = state.shape
    A = action.shape[-1]
    H = w2.shape[0]

    # Batch tile selection:
    #  * small B: one tile (padded to 8 sublanes), single grid step.
    #  * large B: tiles of up to `block_b` rows (amortize per-step overhead on
    #    single-TC v5e/v6e), but never fewer than 2 grid steps so both v7x
    #    TensorCores get work ("parallel" grid axis).
    if B <= 256:
        bb = _round_up(max(B, 1), 8)
    else:
        bb = min(_round_up(block_b, 128), _round_up((B + 1) // 2, 128))
    B_pad = _round_up(B, bb)
    if B_pad != B:
        state = jnp.pad(state, ((0, B_pad - B), (0, 0)))
        action = jnp.pad(action, ((0, B_pad - B), (0, 0)))

    grid = (B_pad // bb,)

    flops = 2 * B_pad * (S * H + A * H + H * H + H)
    bytes_accessed = (4 * B_pad * (S + A + 1)
                      + 2 * ((S + A) * H + H * H + H)   # bf16 weights
                      + 4 * 2 * H)                      # f32 biases

    # VMEM footprint: double-buffered io tiles + resident bf16 weights + live acts.
    weight_bytes = 2 * ((S + A) * H + H * H + H) + 4 * 2 * H
    io_bytes = 4 * bb * (S + A) + 4 * bb
    act_bytes = bb * H * (4 + 4 + 2 + 2)                # h1, h2 (f32) + bf16 copies
    vmem_need = 2 * (weight_bytes + io_bytes) + act_bytes
    vmem_limit = int(min(max(2 * vmem_need, 4 * 1024 * 1024), 64 * 1024 * 1024))

    out = pl.pallas_call(
        _critic_kernel,
        out_shape=jax.ShapeDtypeStruct((1, B_pad), jnp.float32),
        grid_spec=pltpu.PrefetchScalarGridSpec(
            num_scalar_prefetch=0,
            grid=grid,
            in_specs=[
                pl.BlockSpec((bb, S), lambda i: (i, 0)),   # state tile
                pl.BlockSpec((bb, A), lambda i: (i, 0)),   # action tile
                pl.BlockSpec((S, H), lambda i: (0, 0)),    # W1[:S]  (resident, bf16)
                pl.BlockSpec((A, H), lambda i: (0, 0)),    # W1[S:]  (resident, bf16)
                pl.BlockSpec((1, H), lambda i: (0, 0)),    # b1 (f32)
                pl.BlockSpec((H, H), lambda i: (0, 0)),    # W2      (resident, bf16)
                pl.BlockSpec((1, H), lambda i: (0, 0)),    # b2 (f32)
                pl.BlockSpec((1, H), lambda i: (0, 0)),    # Wq row vector (bf16)
            ],
            out_specs=pl.BlockSpec((1, bb), lambda i: (0, i)),  # lane-dense q slab
        ),
        compiler_params=pltpu.CompilerParams(
            dimension_semantics=("parallel",),
            vmem_limit_bytes=vmem_limit,
        ),
        cost_estimate=pl.CostEstimate(
            flops=flops, transcendentals=0, bytes_accessed=bytes_accessed),
    )(state, action, w1s, w1a, b1_r, w2, b2_r, wqt)

    # (1, B_pad) -> (B, 1), add the scalar head bias outside the kernel.
    q = out[0, :B].reshape(B, 1) + bq
    return q


def init_critic_params(key, state_dim, action_dim, hidden_dim):
    """Deterministic init mirroring nn.Linear default (uniform +- 1/sqrt(fan_in))."""
    d_in = state_dim + action_dim
    ks = jax.random.split(key, 6)

    def lin(kw, kb, fan_in, fan_out):
        bound = 1.0 / jnp.sqrt(float(fan_in))
        w = jax.random.uniform(kw, (fan_in, fan_out), jnp.float32, -bound, bound)
        b = jax.random.uniform(kb, (fan_out,), jnp.float32, -bound, bound)
        return w, b

    w1, b1 = lin(ks[0], ks[1], d_in, hidden_dim)
    w2, b2 = lin(ks[2], ks[3], hidden_dim, hidden_dim)
    wq, bq = lin(ks[4], ks[5], hidden_dim, 1)
    return (w1, b1, w2, b2, wq, bq)


def critic_reference(state, action, params):
    """Pure-JAX f32 reference for correctness checking."""
    w1, b1, w2, b2, wq, bq = params
    x = jnp.concatenate([state, action], axis=-1)
    h1 = jax.nn.relu(x @ w1 + b1)
    h2 = jax.nn.relu(h1 @ w2 + b2)
    return h2 @ wq + bq


if __name__ == "__main__":
    key = jax.random.PRNGKey(0)
    k_params, k_state, k_action = jax.random.split(key, 3)

    batch = 8
    state_dim = 16
    action_dim = 4
    hidden_dim = 256   # matches the PyTorch default; multiple of 128 for full MXU lanes

    params = init_critic_params(k_params, state_dim, action_dim, hidden_dim)
    prepped = prepare_critic_params(params, state_dim)   # one-time bf16 weight prep

    state = jax.random.normal(k_state, (batch, state_dim), jnp.float32)
    action = jax.random.normal(k_action, (batch, action_dim), jnp.float32)

    q = critic_forward(state, action, prepped)
    q = jax.block_until_ready(q)

    q_ref = critic_reference(state, action, params)
    assert q.shape == (batch, 1), q.shape
    # bf16 matmul operands (f32 accumulation): tolerance relaxed vs. the f32 reference.
    assert jnp.allclose(q, q_ref, atol=2e-2, rtol=2e-2), "mismatch vs reference"

    print("KERNEL_OK")
</pallas_src>

<mosaic_0001>
module attributes {stable_mosaic.version = 11 : i64} {
  func.func @_critic_kernel(%arg0: i32, %arg1: memref<8x16xf32, #tpu.memory_space<vmem>>, %arg2: memref<8x4xf32, #tpu.memory_space<vmem>>, %arg3: memref<16x256xbf16, #tpu.memory_space<vmem>>, %arg4: memref<4x256xbf16, #tpu.memory_space<vmem>>, %arg5: memref<1x256xf32, #tpu.memory_space<vmem>>, %arg6: memref<256x256xbf16, #tpu.memory_space<vmem>>, %arg7: memref<1x256xf32, #tpu.memory_space<vmem>>, %arg8: memref<1x256xbf16, #tpu.memory_space<vmem>>, %arg9: memref<1x8xf32, #tpu.memory_space<vmem>>) attributes {dimension_semantics = [#tpu.dimension_semantics<parallel>], iteration_bounds = array<i64: 1>, scalar_prefetch = 0 : i64, scratch_operands = 0 : i64, tpu.core_type = #tpu.core_type<tc>, window_params = [{transform_indices = @transform_0, window_bounds = array<i64: 8, 16>}, {transform_indices = @transform_1, window_bounds = array<i64: 8, 4>}, {pipeline_mode = #tpu.pipeline_mode<synchronous>, transform_indices = @transform_2, window_bounds = array<i64: 16, 256>}, {pipeline_mode = #tpu.pipeline_mode<synchronous>, transform_indices = @transform_3, window_bounds = array<i64: 4, 256>}, {pipeline_mode = #tpu.pipeline_mode<synchronous>, transform_indices = @transform_4, window_bounds = array<i64: 1, 256>}, {pipeline_mode = #tpu.pipeline_mode<synchronous>, transform_indices = @transform_5, window_bounds = array<i64: 256, 256>}, {pipeline_mode = #tpu.pipeline_mode<synchronous>, transform_indices = @transform_6, window_bounds = array<i64: 1, 256>}, {pipeline_mode = #tpu.pipeline_mode<synchronous>, transform_indices = @transform_7, window_bounds = array<i64: 1, 256>}, {transform_indices = @transform_8, window_bounds = array<i64: 1, 8>}]} {
    %c0 = arith.constant 0 : index
    %c0_0 = arith.constant 0 : index
    %0 = vector.load %arg1[%c0, %c0_0] : memref<8x16xf32, #tpu.memory_space<vmem>>, vector<8x16xf32>
    %1 = arith.truncf %0 : vector<8x16xf32> to vector<8x16xbf16>
    %c0_1 = arith.constant 0 : index
    %c0_2 = arith.constant 0 : index
    %2 = vector.load %arg2[%c0_1, %c0_2] : memref<8x4xf32, #tpu.memory_space<vmem>>, vector<8x4xf32>
    %3 = arith.truncf %2 : vector<8x4xf32> to vector<8x4xbf16>
    %c0_3 = arith.constant 0 : index
    %c0_4 = arith.constant 0 : index
    %4 = vector.load %arg3[%c0_3, %c0_4] : memref<16x256xbf16, #tpu.memory_space<vmem>>, vector<16x256xbf16>
    %cst = arith.constant dense<0.000000e+00> : vector<8x256xf32>
    %5 = tpu.matmul %1, %4, %cst {dimension_numbers = #tpu.dot_dimension_numbers<[1], [0], [0], [1], [0, 0, 1, 1], [], []>} : vector<8x16xbf16>, vector<16x256xbf16>, vector<8x256xf32> -> vector<8x256xf32>
    %c0_5 = arith.constant 0 : index
    %c0_6 = arith.constant 0 : index
    %6 = vector.load %arg4[%c0_5, %c0_6] : memref<4x256xbf16, #tpu.memory_space<vmem>>, vector<4x256xbf16>
    %cst_7 = arith.constant dense<0.000000e+00> : vector<8x256xf32>
    %7 = tpu.matmul %3, %6, %cst_7 {dimension_numbers = #tpu.dot_dimension_numbers<[1], [0], [0], [1], [0, 0, 1, 1], [], []>} : vector<8x4xbf16>, vector<4x256xbf16>, vector<8x256xf32> -> vector<8x256xf32>
    %8 = arith.addf %5, %7 : vector<8x256xf32>
    %c0_8 = arith.constant 0 : index
    %c0_9 = arith.constant 0 : index
    %9 = vector.load %arg5[%c0_8, %c0_9] : memref<1x256xf32, #tpu.memory_space<vmem>>, vector<1x256xf32>
    %10 = vector.broadcast %9 : vector<1x256xf32> to vector<8x256xf32>
    %11 = arith.addf %8, %10 : vector<8x256xf32>
    %cst_10 = arith.constant 0.000000e+00 : f32
    %12 = vector.broadcast %cst_10 : f32 to vector<8x256xf32>
    %13 = arith.maximumf %11, %12 : vector<8x256xf32>
    %14 = arith.truncf %13 : vector<8x256xf32> to vector<8x256xbf16>
    %c0_11 = arith.constant 0 : index
    %c0_12 = arith.constant 0 : index
    %15 = vector.load %arg6[%c0_11, %c0_12] : memref<256x256xbf16, #tpu.memory_space<vmem>>, vector<256x256xbf16>
    %cst_13 = arith.constant dense<0.000000e+00> : vector<8x256xf32>
    %16 = tpu.matmul %14, %15, %cst_13 {dimension_numbers = #tpu.dot_dimension_numbers<[1], [0], [0], [1], [0, 0, 1, 1], [], []>} : vector<8x256xbf16>, vector<256x256xbf16>, vector<8x256xf32> -> vector<8x256xf32>
    %c0_14 = arith.constant 0 : index
    %c0_15 = arith.constant 0 : index
    %17 = vector.load %arg7[%c0_14, %c0_15] : memref<1x256xf32, #tpu.memory_space<vmem>>, vector<1x256xf32>
    %18 = vector.broadcast %17 : vector<1x256xf32> to vector<8x256xf32>
    %19 = arith.addf %16, %18 : vector<8x256xf32>
    %cst_16 = arith.constant 0.000000e+00 : f32
    %20 = vector.broadcast %cst_16 : f32 to vector<8x256xf32>
    %21 = arith.maximumf %19, %20 : vector<8x256xf32>
    %c0_17 = arith.constant 0 : index
    %c0_18 = arith.constant 0 : index
    %22 = vector.load %arg8[%c0_17, %c0_18] : memref<1x256xbf16, #tpu.memory_space<vmem>>, vector<1x256xbf16>
    %23 = arith.truncf %21 : vector<8x256xf32> to vector<8x256xbf16>
    %cst_19 = arith.constant dense<0.000000e+00> : vector<1x8xf32>
    %24 = tpu.matmul %22, %23, %cst_19 {dimension_numbers = #tpu.dot_dimension_numbers<[1], [1], [0], [0], [0, 0, 1, 0], [], []>} : vector<1x256xbf16>, vector<8x256xbf16>, vector<1x8xf32> -> vector<1x8xf32>
    %c0_20 = arith.constant 0 : index
    %c0_21 = arith.constant 0 : index
    %25 = vector.load %arg9[%c0_20, %c0_21] : memref<1x8xf32, #tpu.memory_space<vmem>>, vector<1x8xf32>
    tpu.vector_store %arg9[%c0_20, %c0_21], %24 {strides = array<i32>} : memref<1x8xf32, #tpu.memory_space<vmem>>, vector<1x8xf32>,
    return
  }
  func.func @transform_0(%arg0: i32) -> (i32, i32) {
    %c0_i32 = arith.constant 0 : i32
    %c0_i32_0 = arith.constant 0 : i32
    return %arg0, %c0_i32 : i32, i32
  }
  func.func @transform_1(%arg0: i32) -> (i32, i32) {
    %c0_i32 = arith.constant 0 : i32
    %c0_i32_0 = arith.constant 0 : i32
    return %arg0, %c0_i32 : i32, i32
  }
  func.func @transform_2(%arg0: i32) -> (i32, i32) {
    %c0_i32 = arith.constant 0 : i32
    %c0_i32_0 = arith.constant 0 : i32
    %c0_i32_1 = arith.constant 0 : i32
    return %c0_i32, %c0_i32_0 : i32, i32
  }
  func.func @transform_3(%arg0: i32) -> (i32, i32) {
    %c0_i32 = arith.constant 0 : i32
    %c0_i32_0 = arith.constant 0 : i32
    %c0_i32_1 = arith.constant 0 : i32
    return %c0_i32, %c0_i32_0 : i32, i32
  }
  func.func @transform_4(%arg0: i32) -> (i32, i32) {
    %c0_i32 = arith.constant 0 : i32
    %c0_i32_0 = arith.constant 0 : i32
    %c0_i32_1 = arith.constant 0 : i32
    return %c0_i32, %c0_i32_0 : i32, i32
  }
  func.func @transform_5(%arg0: i32) -> (i32, i32) {
    %c0_i32 = arith.constant 0 : i32
    %c0_i32_0 = arith.constant 0 : i32
    %c0_i32_1 = arith.constant 0 : i32
    return %c0_i32, %c0_i32_0 : i32, i32
  }
  func.func @transform_6(%arg0: i32) -> (i32, i32) {
    %c0_i32 = arith.constant 0 : i32
    %c0_i32_0 = arith.constant 0 : i32
    %c0_i32_1 = arith.constant 0 : i32
    return %c0_i32, %c0_i32_0 : i32, i32
  }
  func.func @transform_7(%arg0: i32) -> (i32, i32) {
    %c0_i32 = arith.constant 0 : i32
    %c0_i32_0 = arith.constant 0 : i32
    %c0_i32_1 = arith.constant 0 : i32
    return %c0_i32, %c0_i32_0 : i32, i32
  }
  func.func @transform_8(%arg0: i32) -> (i32, i32) {
    %c0_i32 = arith.constant 0 : i32
    %c0_i32_0 = arith.constant 0 : i32
    return %c0_i32, %arg0 : i32, i32
  }
}

</mosaic_0001>

<llo_original>
// kernel: critic_forward.1
$region0: #{critic_forward.1}
  #allocation0 [shape = 'u32[]', space=smem, size = 0x4, offset = 0x4, fixed_abs, tag = 'smem constant byte address 0x4 - core index']
  #allocation1 [shape = 'u32[144,128]{1,0:T(1,128)}', space=vmem, size = 0x12000, scoped, tag = 'internal scratch']
  %s0 = inlined_call_operand.vmem [shape: f32[8,16], index: 0, kind: input, shape index: {}]
  %s1 = inlined_call_operand.vmem [shape: f32[8,4], index: 1, kind: input, shape index: {}]
  %s2 = inlined_call_operand.vmem [shape: bf16[16,256], index: 2, kind: input, shape index: {}]
  %s3 = inlined_call_operand.vmem [shape: bf16[4,256], index: 3, kind: input, shape index: {}]
  %s4 = inlined_call_operand.vmem [shape: f32[1,256], index: 4, kind: input, shape index: {}]
  %s5 = inlined_call_operand.hbm [shape: bf16[256,256], index: 5, kind: input, shape index: {}]
  %s6 = inlined_call_operand.hbm [shape: f32[1,256], index: 6, kind: input, shape index: {}]
  %s7 = inlined_call_operand.hbm [shape: bf16[1,256], index: 7, kind: input, shape index: {}]
  %s8 = inlined_call_operand.vmem [shape: f32[1,8], index: 8, kind: output, shape index: {}]
  %s9 = sld [smem:[#allocation0]]
  $region54: #{critic_forward.1} parent=0
    _
  %s11 = ssub.s32 1, %s9
  %s12 = scalar_select 0, %s11, %s9
  $region1: #{critic_forward.1} parent=0
    #allocation2 [shape = 'u8[131072]{0}', space=vmem, size = 0x20000, scoped, tag = 'input window, operand 5, single buffered']
    #allocation3 [shape = 's32[1]{0}', space=sflag, size = 0x4, scoped, tag = 'scoped memory for critic_forward.1']
    #allocation4 [shape = 'u8[1024]{0}', space=vmem, size = 0x400, scoped, tag = 'input window, operand 6, single buffered']
    #allocation5 [shape = 's32[1]{0}', space=sflag, size = 0x4, scoped, tag = 'scoped memory for critic_forward.1']
    #allocation6 [shape = 'u8[1024]{0}', space=vmem, size = 0x400, scoped, tag = 'input window, operand 7, single buffered']
    %13 = vsyncpa [#allocation3], 0
    %14 = vsyncpa [#allocation5], 0
    // Predicated region
    $region2: #{critic_forward.1} parent=1 // pred_check
      _
    $region3: #{critic_forward.1} parent=1 // pred_check_branch
      %16 = sbr.rel (0) target = $region5
    $region4: #{critic_forward.1} parent=1 // pred_region
      _
    $region5: #{critic_forward.1} parent=1 // pred_fallthru
      _
    // Predicated region
    $region6: #{critic_forward.1} parent=1 // pred_check
      _
    $region7: #{critic_forward.1} parent=1 // pred_check_branch
      %18 = sbr.rel (0) target = $region9
    $region8: #{critic_forward.1} parent=1 // pred_region
      _
    $region9: #{critic_forward.1} parent=1 // pred_fallthru
      _
    // Predicated region
    $region10: #{critic_forward.1} parent=1 // pred_check
      _
    $region11: #{critic_forward.1} parent=1 // pred_check_branch
      %20 = sbr.rel (0) target = $region13
    $region12: #{critic_forward.1} parent=1 // pred_region
      _
    $region13: #{critic_forward.1} parent=1 // pred_fallthru
      _
    // Predicated region
    $region14: #{critic_forward.1} parent=1 // pred_check
      _
    $region15: #{critic_forward.1} parent=1 // pred_check_branch
      %22 = sbr.rel (0) target = $region17
    $region16: #{critic_forward.1} parent=1 // pred_region
      _
    $region17: #{critic_forward.1} parent=1 // pred_fallthru
      _
    // Predicated region
    $region18: #{critic_forward.1} parent=1 // pred_check
      _
    $region19: #{critic_forward.1} parent=1 // pred_check_branch
      %24 = sbr.rel (0) target = $region21
    $region20: #{critic_forward.1} parent=1 // pred_region
      _
    $region21: #{critic_forward.1} parent=1 // pred_fallthru
      _
    // Predicated region
    $region22: #{critic_forward.1} parent=1 // pred_check
      _
    $region23: #{critic_forward.1} parent=1 // pred_check_branch
      %26 = sbr.rel (0) target = $region25
    $region24: #{critic_forward.1} parent=1 // pred_region
      %s28 = ssub.s32 4096, 4096
      %29 = vsyncadd [#allocation3], %s28
      %s30 = sshll.u32 [#allocation2], 4
      %s31 = int_to_ptr.vmem [resolvable:$true] %s30
      %36 = dma.hbm_to_vmem [thread:$0]  %s5, 4096, %s31, [#allocation3], 128, 128, 8
    $region25: #{critic_forward.1} parent=1 // pred_fallthru
      _
    // Predicated region
    $region26: #{critic_forward.1} parent=1 // pred_check
      _
    $region27: #{critic_forward.1} parent=1 // pred_check_branch
      %38 = sbr.rel (0) target = $region29
    $region28: #{critic_forward.1} parent=1 // pred_region
      %s40 = ssub.s32 32, 32
      %41 = vsyncadd [#allocation5], %s40
      %s43 = sshll.u32 [#allocation4], 4
      %s44 = int_to_ptr.vmem [resolvable:$true] %s43
      %46 = dma.hbm_to_vmem [thread:$0]  %s6, 32, %s44, [#allocation5]
    $region29: #{critic_forward.1} parent=1 // pred_fallthru
      _
    // Predicated region
    $region30: #{critic_forward.1} parent=1 // pred_check
      _
    $region31: #{critic_forward.1} parent=1 // pred_check_branch
      %48 = sbr.rel (0) target = $region33
    $region32: #{critic_forward.1} parent=1 // pred_region
      %s50 = ssub.s32 32, 32
      %51 = vsyncadd [#allocation5], %s50
      %s53 = sshll.u32 [#allocation6], 4
      %s54 = int_to_ptr.vmem [resolvable:$true] %s53
      %56 = dma.hbm_to_vmem [thread:$0]  %s7, 32, %s54, [#allocation5]
    $region33: #{critic_forward.1} parent=1 // pred_fallthru
      _
    // Predicated region
    $region34: #{critic_forward.1} parent=1 // pred_check
      _
    $region35: #{critic_forward.1} parent=1 // pred_check_branch
      %58 = sbr.rel (0) target = $region37
    $region36: #{critic_forward.1} parent=1 // pred_region
      %59 = dma.done [#allocation3], 4096
    $region37: #{critic_forward.1} parent=1 // pred_fallthru
      _
    // Predicated region
    $region38: #{critic_forward.1} parent=1 // pred_check
      _
    $region39: #{critic_forward.1} parent=1 // pred_check_branch
      %61 = sbr.rel (0) target = $region41
    $region40: #{critic_forward.1} parent=1 // pred_region
      %62 = dma.done [#allocation5], 32
    $region41: #{critic_forward.1} parent=1 // pred_fallthru
      _
    // Predicated region
    $region42: #{critic_forward.1} parent=1 // pred_check
      _
    $region43: #{critic_forward.1} parent=1 // pred_check_branch
      %64 = sbr.rel (0) target = $region45
    $region44: #{critic_forward.1} parent=1 // pred_region
      %65 = dma.done [#allocation5], 32
    $region45: #{critic_forward.1} parent=1 // pred_fallthru
      _
    %v67 = vld [vmem:[%s0] sm:$0xff]
    %v68 = vpack.c.bf16 %v67, %v67
    %v69 = vld [vmem:[%s1] sm:$0xff]
    %v70 = vpack.c.bf16 %v69, %v69
    %v71 = vld [vmem:[%s2] sm:$0xff]
    %v72 = vld [vmem:[%s2 + $0x8] sm:$0xff]
    %v73 = vld [vmem:[%s3] sm:$0xf]
    %v76 = vunpack.c.l.s4 1983009808
    %v77 = vunpack.c.0.s8 %v76
    %v78 = vlaneseq
    %v79 = vshrl.u32 %v78, 7
    %v80 = vsub.s32 %v77, %v79
    %v81 = vrot.slane %v73, %v80
    %v82 = vcombine.high %v81, %v81
    %vm83 = vcmask 31744
    %v85 = vsel %vm83, %v70, 0
    %vm87 = vcmask 1041408
    %v89 = vsel %vm87, %v81, 0
    %v92 = vsel %vm87, %v82, 0
    %94 = vmatprep.subr.bf16.mxu0 %v92
    %95 = vmatpush1.bf16.msra.mxu0 %v89
    %96 = vmatprep.subr.bf16.mxu0 0
    %97 = vmatpush1.bf16.msra.mxu0 0
    %98 = vmatprep.subr.bf16.mxu0 0
    %99 = vmatpush1.bf16.msra.mxu0 0
    %100 = vmatprep.subr.bf16.mxu0 0
    %101 = vmatpush1.bf16.msra.mxu0 0
    %102 = vmatprep.subr.bf16.mxu0 0
    %103 = vmatpush1.bf16.msra.mxu0 0
    %104 = vmatprep.subr.bf16.mxu0 0
    %105 = vmatpush1.bf16.msra.mxu0 0
    %106 = vmatprep.subr.bf16.mxu0 0
    %107 = vmatpush1.bf16.msra.mxu0 0
    %108 = vmatprep.subr.bf16.mxu0 0
    %109 = vmatpush1.bf16.msra.mxu0 0
    %110 = vmatprep.subr.bf16.mxu0 0
    %111 = vmatpush1.bf16.msra.mxu0 0
    %112 = vmatprep.subr.bf16.mxu0 0
    %113 = vmatpush1.bf16.msra.mxu0 0
    %114 = vmatprep.subr.bf16.mxu0 0
    %115 = vmatpush1.bf16.msra.mxu0 0
    %116 = vmatprep.subr.bf16.mxu0 0
    %117 = vmatpush1.bf16.msra.mxu0 0
    %118 = vmatprep.subr.bf16.mxu0 0
    %119 = vmatpush1.bf16.msra.mxu0 0
    %120 = vmatprep.subr.bf16.mxu0 0
    %121 = vmatpush1.bf16.msra.mxu0 0
    %122 = vmatprep.subr.bf16.mxu0 0
    %123 = vmatpush1.bf16.msra.mxu0 0
    %124 = vmatprep.subr.bf16.mxu0 0
    %125 = vmatpush1.bf16.msra.mxu0 0
    %126 = vmatprep.mubr.bf16.mxu0 0
    %127 = vmatmul.mubr.bf16.gmra.mrb[0].mxu0 %v85
    %v128 = vpop.f32.mrb[0].mxu0
    %v129 = vadd.f32 0.0, %v128
    %v130 = vpop.f32.mrb[0].mxu0
    %v131 = vadd.f32 0.0, %v130
    %v132 = vpop.f32.mrb[0].mxu0
    %v133 = vpop.f32.mrb[0].mxu0
    %134 = vdwg.mxu0
    %v137 = vunpack.c.l.b16 %v71
    %v138 = vunpack.c.h.b16 %v71
    %v139 = vunpack.c.l.b16 %v72
    %v140 = vunpack.c.h.b16 %v72
    %v141 = vpack.c.b16 %v139, %v137
    %v142 = vpack.c.b16 %v140, %v138
    %vm145 = vcmask 130048
    %v147 = vsel %vm145, %v68, 0
    %149 = vmatprep.subr.bf16.mxu0 %v142
    %150 = vmatpush1.bf16.msra.mxu0 %v141
    %151 = vmatprep.subr.bf16.mxu0 0
    %152 = vmatpush1.bf16.msra.mxu0 0
    %153 = vmatprep.subr.bf16.mxu0 0
    %154 = vmatpush1.bf16.msra.mxu0 0
    %155 = vmatprep.subr.bf16.mxu0 0
    %156 = vmatpush1.bf16.msra.mxu0 0
    %157 = vmatprep.subr.bf16.mxu0 0
    %158 = vmatpush1.bf16.msra.mxu0 0
    %159 = vmatprep.subr.bf16.mxu0 0
    %160 = vmatpush1.bf16.msra.mxu0 0
    %161 = vmatprep.subr.bf16.mxu0 0
    %162 = vmatpush1.bf16.msra.mxu0 0
    %163 = vmatprep.subr.bf16.mxu0 0
    %164 = vmatpush1.bf16.msra.mxu0 0
    %165 = vmatprep.subr.bf16.mxu0 0
    %166 = vmatpush1.bf16.msra.mxu0 0
    %167 = vmatprep.subr.bf16.mxu0 0
    %168 = vmatpush1.bf16.msra.mxu0 0
    %169 = vmatprep.subr.bf16.mxu0 0
    %170 = vmatpush1.bf16.msra.mxu0 0
    %171 = vmatprep.subr.bf16.mxu0 0
    %172 = vmatpush1.bf16.msra.mxu0 0
    %173 = vmatprep.subr.bf16.mxu0 0
    %174 = vmatpush1.bf16.msra.mxu0 0
    %175 = vmatprep.subr.bf16.mxu0 0
    %176 = vmatpush1.bf16.msra.mxu0 0
    %177 = vmatprep.subr.bf16.mxu0 0
    %178 = vmatpush1.bf16.msra.mxu0 0
    %179 = vmatprep.subr.bf16.mxu0 0
    %180 = vmatpush1.bf16.msra.mxu0 0
    %181 = vmatprep.mubr.bf16.mxu0 0
    %182 = vmatmul.mubr.bf16.gmra.mrb[0].mxu0 %v147
    %v183 = vpop.f32.mrb[0].mxu0
    %v184 = vadd.f32 %v129, %v183
    %v185 = vpop.f32.mrb[0].mxu0
    %v186 = vadd.f32 %v131, %v185
    %v187 = vpop.f32.mrb[0].mxu0
    %v188 = vpop.f32.mrb[0].mxu0
    %189 = vdwg.mxu0
    %v190 = vld [vmem:[%s4] sm:$0x3]
    %v192 = vlaneseq
    %v193 = vshrl.u32 %v192, 7
    %v194 = vsub.s32 0, %v193
    %v195 = vrot.slane %v190, %v194
    %v196 = vlaneseq
    %v197 = vshrl.u32 %v196, 7
    %v198 = vsub.s32 1, %v197
    %v199 = vrot.slane %v190, %v198
    %v202 = vadd.f32 %v184, %v195
    %v203 = vadd.f32 %v186, %v199
    %v204 = vmax.f32 %v202, 0.0
    %v205 = vmax.f32 %v203, 0.0
    %v206 = vpack.c.bf16 %v204, %v204
    %v207 = vpack.c.bf16 %v205, %v205
    %v208 = vld [vmem:[#allocation2] sm:$0xff]
    %v209 = vld [vmem:[#allocation2 + $0x8] sm:$0xff]
    %v210 = vld [vmem:[#allocation2 + $0x10] sm:$0xff]
    %v211 = vld [vmem:[#allocation2 + $0x18] sm:$0xff]
    %v212 = vld [vmem:[#allocation2 + $0x20] sm:$0xff]
    %v213 = vld [vmem:[#allocation2 + $0x28] sm:$0xff]
    %v214 = vld [vmem:[#allocation2 + $0x30] sm:$0xff]
    %v215 = vld [vmem:[#allocation2 + $0x38] sm:$0xff]
    %v216 = vld [vmem:[#allocation2 + $0x40] sm:$0xff]
    %v217 = vld [vmem:[#allocation2 + $0x48] sm:$0xff]
    %v218 = vld [vmem:[#allocation2 + $0x50] sm:$0xff]
    %v219 = vld [vmem:[#allocation2 + $0x58] sm:$0xff]
    %v220 = vld [vmem:[#allocation2 + $0x60] sm:$0xff]
    %v221 = vld [vmem:[#allocation2 + $0x68] sm:$0xff]
    %v222 = vld [vmem:[#allocation2 + $0x70] sm:$0xff]
    %v223 = vld [vmem:[#allocation2 + $0x78] sm:$0xff]
    %v224 = vld [vmem:[#allocation2 + $0x80] sm:$0xff]
    %v225 = vld [vmem:[#allocation2 + $0x88] sm:$0xff]
    %v226 = vld [vmem:[#allocation2 + $0x90] sm:$0xff]
    %v227 = vld [vmem:[#allocation2 + $0x98] sm:$0xff]
    %v228 = vld [vmem:[#allocation2 + $0xa0] sm:$0xff]
    %v229 = vld [vmem:[#allocation2 + $0xa8] sm:$0xff]
    %v230 = vld [vmem:[#allocation2 + $0xb0] sm:$0xff]
    %v231 = vld [vmem:[#allocation2 + $0xb8] sm:$0xff]
    %v232 = vld [vmem:[#allocation2 + $0xc0] sm:$0xff]
    %v233 = vld [vmem:[#allocation2 + $0xc8] sm:$0xff]
    %v234 = vld [vmem:[#allocation2 + $0xd0] sm:$0xff]
    %v235 = vld [vmem:[#allocation2 + $0xd8] sm:$0xff]
    %v236 = vld [vmem:[#allocation2 + $0xe0] sm:$0xff]
    %v237 = vld [vmem:[#allocation2 + $0xe8] sm:$0xff]
    %v238 = vld [vmem:[#allocation2 + $0xf0] sm:$0xff]
    %v239 = vld [vmem:[#allocation2 + $0xf8] sm:$0xff]
    %v240 = vld [vmem:[#allocation4] sm:$0x3]
    %v242 = vlaneseq
    %v243 = vshrl.u32 %v242, 7
    %v244 = vsub.s32 0, %v243
    %v245 = vrot.slane %v240, %v244
    %v246 = vlaneseq
    %v247 = vshrl.u32 %v246, 7
    %v248 = vsub.s32 1, %v247
    %v249 = vrot.slane %v240, %v248
    %v284 = vunpack.c.l.b16 %v208
    %v285 = vunpack.c.h.b16 %v208
    %v286 = vunpack.c.l.b16 %v209
    %v287 = vunpack.c.h.b16 %v209
    %v288 = vunpack.c.l.b16 %v210
    %v289 = vunpack.c.h.b16 %v210
    %v290 = vunpack.c.l.b16 %v211
    %v291 = vunpack.c.h.b16 %v211
    %v292 = vunpack.c.l.b16 %v212
    %v293 = vunpack.c.h.b16 %v212
    %v294 = vunpack.c.l.b16 %v213
    %v295 = vunpack.c.h.b16 %v213
    %v296 = vunpack.c.l.b16 %v214
    %v297 = vunpack.c.h.b16 %v214
    %v298 = vunpack.c.l.b16 %v215
    %v299 = vunpack.c.h.b16 %v215
    %v300 = vunpack.c.l.b16 %v216
    %v301 = vunpack.c.h.b16 %v216
    %v302 = vunpack.c.l.b16 %v217
    %v303 = vunpack.c.h.b16 %v217
    %v304 = vunpack.c.l.b16 %v218
    %v305 = vunpack.c.h.b16 %v218
    %v306 = vunpack.c.l.b16 %v219
    %v307 = vunpack.c.h.b16 %v219
    %v308 = vunpack.c.l.b16 %v220
    %v309 = vunpack.c.h.b16 %v220
    %v310 = vunpack.c.l.b16 %v221
    %v311 = vunpack.c.h.b16 %v221
    %v312 = vunpack.c.l.b16 %v222
    %v313 = vunpack.c.h.b16 %v222
    %v314 = vunpack.c.l.b16 %v223
    %v315 = vunpack.c.h.b16 %v223
    %v316 = vunpack.c.l.b16 %v224
    %v317 = vunpack.c.h.b16 %v224
    %v318 = vunpack.c.l.b16 %v225
    %v319 = vunpack.c.h.b16 %v225
    %v320 = vunpack.c.l.b16 %v226
    %v321 = vunpack.c.h.b16 %v226
    %v322 = vunpack.c.l.b16 %v227
    %v323 = vunpack.c.h.b16 %v227
    %v324 = vunpack.c.l.b16 %v228
    %v325 = vunpack.c.h.b16 %v228
    %v326 = vunpack.c.l.b16 %v229
    %v327 = vunpack.c.h.b16 %v229
    %v328 = vunpack.c.l.b16 %v230
    %v329 = vunpack.c.h.b16 %v230
    %v330 = vunpack.c.l.b16 %v231
    %v331 = vunpack.c.h.b16 %v231
    %v332 = vunpack.c.l.b16 %v232
    %v333 = vunpack.c.h.b16 %v232
    %v334 = vunpack.c.l.b16 %v233
    %v335 = vunpack.c.h.b16 %v233
    %v336 = vunpack.c.l.b16 %v234
    %v337 = vunpack.c.h.b16 %v234
    %v338 = vunpack.c.l.b16 %v235
    %v339 = vunpack.c.h.b16 %v235
    %v340 = vunpack.c.l.b16 %v236
    %v341 = vunpack.c.h.b16 %v236
    %v342 = vunpack.c.l.b16 %v237
    %v343 = vunpack.c.h.b16 %v237
    %v344 = vunpack.c.l.b16 %v238
    %v345 = vunpack.c.h.b16 %v238
    %v346 = vunpack.c.l.b16 %v239
    %v347 = vunpack.c.h.b16 %v239
    %v348 = vpack.c.b16 %v286, %v284
    %v349 = vpack.c.b16 %v287, %v285
    %v350 = vpack.c.b16 %v290, %v288
    %v351 = vpack.c.b16 %v291, %v289
    %v352 = vpack.c.b16 %v294, %v292
    %v353 = vpack.c.b16 %v295, %v293
    %v354 = vpack.c.b16 %v298, %v296
    %v355 = vpack.c.b16 %v299, %v297
    %v356 = vpack.c.b16 %v302, %v300
    %v357 = vpack.c.b16 %v303, %v301
    %v358 = vpack.c.b16 %v306, %v304
    %v359 = vpack.c.b16 %v307, %v305
    %v360 = vpack.c.b16 %v310, %v308
    %v361 = vpack.c.b16 %v311, %v309
    %v362 = vpack.c.b16 %v314, %v312
    %v363 = vpack.c.b16 %v315, %v313
    %v364 = vpack.c.b16 %v318, %v316
    %v365 = vpack.c.b16 %v319, %v317
    %v366 = vpack.c.b16 %v322, %v320
    %v367 = vpack.c.b16 %v323, %v321
    %v368 = vpack.c.b16 %v326, %v324
    %v369 = vpack.c.b16 %v327, %v325
    %v370 = vpack.c.b16 %v330, %v328
    %v371 = vpack.c.b16 %v331, %v329
    %v372 = vpack.c.b16 %v334, %v332
    %v373 = vpack.c.b16 %v335, %v333
    %v374 = vpack.c.b16 %v338, %v336
    %v375 = vpack.c.b16 %v339, %v337
    %v376 = vpack.c.b16 %v342, %v340
    %v377 = vpack.c.b16 %v343, %v341
    %v378 = vpack.c.b16 %v346, %v344
    %v379 = vpack.c.b16 %v347, %v345
    %412 = vmatprep.subr.bf16.mxu0 %v349
    %413 = vmatpush1.bf16.msra.mxu0 %v348
    %414 = vmatprep.subr.bf16.mxu0 %v351
    %415 = vmatpush1.bf16.msra.mxu0 %v350
    %416 = vmatprep.subr.bf16.mxu0 %v353
    %417 = vmatpush1.bf16.msra.mxu0 %v352
    %418 = vmatprep.subr.bf16.mxu0 %v355
    %419 = vmatpush1.bf16.msra.mxu0 %v354
    %420 = vmatprep.subr.bf16.mxu0 %v357
    %421 = vmatpush1.bf16.msra.mxu0 %v356
    %422 = vmatprep.subr.bf16.mxu0 %v359
    %423 = vmatpush1.bf16.msra.mxu0 %v358
    %424 = vmatprep.subr.bf16.mxu0 %v361
    %425 = vmatpush1.bf16.msra.mxu0 %v360
    %426 = vmatprep.subr.bf16.mxu0 %v363
    %427 = vmatpush1.bf16.msra.mxu0 %v362
    %428 = vmatprep.subr.bf16.mxu0 %v365
    %429 = vmatpush1.bf16.msra.mxu0 %v364
    %430 = vmatprep.subr.bf16.mxu0 %v367
    %431 = vmatpush1.bf16.msra.mxu0 %v366
    %432 = vmatprep.subr.bf16.mxu0 %v369
    %433 = vmatpush1.bf16.msra.mxu0 %v368
    %434 = vmatprep.subr.bf16.mxu0 %v371
    %435 = vmatpush1.bf16.msra.mxu0 %v370
    %436 = vmatprep.subr.bf16.mxu0 %v373
    %437 = vmatpush1.bf16.msra.mxu0 %v372
    %438 = vmatprep.subr.bf16.mxu0 %v375
    %439 = vmatpush1.bf16.msra.mxu0 %v374
    %440 = vmatprep.subr.bf16.mxu0 %v377
    %441 = vmatpush1.bf16.msra.mxu0 %v376
    %442 = vmatprep.subr.bf16.mxu0 %v379
    %443 = vmatpush1.bf16.msra.mxu0 %v378
    %444 = vmatprep.mubr.bf16.mxu0 %v207
    %445 = vmatmul.mubr.bf16.gmra.mrb[0].mxu0 %v206
    %v446 = vpop.f32.mrb[0].mxu0
    %v447 = vadd.f32 %v245, %v446
    %v448 = vpop.f32.mrb[0].mxu0
    %v449 = vadd.f32 %v249, %v448
    %v450 = vpop.f32.mrb[0].mxu0
    %v451 = vpop.f32.mrb[0].mxu0
    %452 = vdwg.mxu0
    %v453 = vmax.f32 %v447, 0.0
    %v454 = vmax.f32 %v449, 0.0
    %v455 = vld [vmem:[#allocation6] sm:$0x3]
    %v456 = vpack.c.bf16 %v453, %v453
    %v457 = vpack.c.bf16 %v454, %v454
    %v460 = vunpack.c.l.s4 1966171168
    %v461 = vunpack.c.0.s8 %v460
    %v462 = vlaneseq
    %v463 = vshrl.u32 %v462, 7
    %v464 = vsub.s32 %v461, %v463
    %v465 = vrot.slane %v455, %v464
    %v466 = vcombine.high %v465, %v465
    %v468 = vunpack.c.l.s4 1966171168
    %v469 = vunpack.c.0.s8 %v468
    %v470 = vlaneseq
    %v471 = vshrl.u32 %v470, 7
    %v472 = vsub.s32 %v469, %v471
    %v473 = vrot.slane %v465, %v472
    %v475 = vunpack.c.l.s4 1966171168
    %v476 = vunpack.c.0.s8 %v475
    %v477 = vlaneseq
    %v478 = vshrl.u32 %v477, 7
    %v479 = vsub.s32 %v476, %v478
    %v480 = vrot.slane %v466, %v479
    %483 = vmatprep.subr.bf16.mxu0 %v457
    %484 = vmatpush1.bf16.xpose.msra.mxu0 %v456
    %485 = vmatprep.subr.bf16.mxu0 0
    %486 = vmatpush1.bf16.xpose.msra.mxu0 0
    %487 = vmatprep.subr.bf16.mxu0 0
    %488 = vmatpush1.bf16.xpose.msra.mxu0 0
    %489 = vmatprep.subr.bf16.mxu0 0
    %490 = vmatpush1.bf16.xpose.msra.mxu0 0
    %491 = vmatprep.subr.bf16.mxu0 0
    %492 = vmatpush1.bf16.xpose.msra.mxu0 0
    %493 = vmatprep.subr.bf16.mxu0 0
    %494 = vmatpush1.bf16.xpose.msra.mxu0 0
    %495 = vmatprep.subr.bf16.mxu0 0
    %496 = vmatpush1.bf16.xpose.msra.mxu0 0
    %497 = vmatprep.subr.bf16.mxu0 0
    %498 = vmatpush1.bf16.xpose.msra.mxu0 0
    %499 = vmatprep.subr.bf16.mxu0 0
    %500 = vmatpush1.bf16.xpose.msra.mxu0 0
    %501 = vmatprep.subr.bf16.mxu0 0
    %502 = vmatpush1.bf16.xpose.msra.mxu0 0
    %503 = vmatprep.subr.bf16.mxu0 0
    %504 = vmatpush1.bf16.xpose.msra.mxu0 0
    %505 = vmatprep.subr.bf16.mxu0 0
    %506 = vmatpush1.bf16.xpose.msra.mxu0 0
    %507 = vmatprep.subr.bf16.mxu0 0
    %508 = vmatpush1.bf16.xpose.msra.mxu0 0
    %509 = vmatprep.subr.bf16.mxu0 0
    %510 = vmatpush1.bf16.xpose.msra.mxu0 0
    %511 = vmatprep.subr.bf16.mxu0 0
    %512 = vmatpush1.bf16.xpose.msra.mxu0 0
    %513 = vmatprep.subr.bf16.mxu0 0
    %514 = vmatpush1.bf16.xpose.msra.mxu0 0
    %515 = vmatprep.mubr.bf16.mxu0 %v480
    %516 = vmatmul.mubr.bf16.gmra.mrb[0].mxu0 %v473
    %v517 = vpop.f32.mrb[0].mxu0
    %v518 = vadd.f32 0.0, %v517
    %v519 = vpop.f32.mrb[0].mxu0
    %v520 = vpop.f32.mrb[0].mxu0
    %v521 = vpop.f32.mrb[0].mxu0
    %522 = vdwg.mxu0
    %vm523 = vcmask 57344
    %524 = vst.msk [vmem:[%s8] sm:$0x1] %vm523, %v518
    // Predicated region
    $region46: #{critic_forward.1} parent=1 // pred_check
      _
    $region47: #{critic_forward.1} parent=1 // pred_check_branch
      %526 = sbr.rel (0) target = $region49
    $region48: #{critic_forward.1} parent=1 // pred_region
      _
    $region49: #{critic_forward.1} parent=1 // pred_fallthru
      _
    // Predicated region
    $region50: #{critic_forward.1} parent=1 // pred_check
      _
    $region51: #{critic_forward.1} parent=1 // pred_check_branch
      %528 = sbr.rel (0) target = $region53
    $region52: #{critic_forward.1} parent=1 // pred_region
      _
    $region53: #{critic_forward.1} parent=1 // pred_fallthru
      _
    %529 = vsyncpa [#allocation3], 1
    %530 = vsyncpa [#allocation5], 1

</llo_original>
